<compile_context>
chip_gen: v7x
topology: tpu7x:2x2x1
jax: 0.10.0
libtpu: 0.0.40
codegen_flags: <defaults>
</compile_context>

<pallas_src>
import functools

import jax
import jax.numpy as jnp
from jax import lax
from jax.experimental import pallas as pl
from jax.experimental.pallas import tpu as pltpu


def _round_up(a: int, m: int) -> int:
    return -(-a // m) * m


def _statpool_kernel(x_ref, o_ref, sum_ref, sumsq_ref, shift_ref, *,
                     t_total: int, t_block: int, sub: int,
                     needs_mask: bool, unroll: int):
    """Grid is (batch_tiles, time_tiles); time is the reduction ("arbitrary") axis.

    Accumulates shifted sums / sums-of-squares in f32 VMEM scratch over (Bt, sub, D)
    sub-slices of the current (Bt, Tk, D) input block, then finalizes mean/std at the
    last time tile with two lane-dense slice stores into a (Bt, 2, D) output block.
    """
    k = pl.program_id(1)
    bt, _, d = x_ref.shape

    @pl.when(k == 0)
    def _():
        # Shift = first frame of this batch tile; makes the single-pass variance
        # robust to |mean| >> std (catastrophic cancellation).
        shift_ref[...] = x_ref[:, 0, :].astype(jnp.float32)
        sum_ref[...] = jnp.zeros_like(sum_ref)
        sumsq_ref[...] = jnp.zeros_like(sumsq_ref)

    # Hoist loop-invariant broadcasts out of the accumulation loop.
    shift = jnp.broadcast_to(shift_ref[...][:, None, :], (bt, sub, d))
    if needs_mask:
        iota = lax.broadcasted_iota(jnp.int32, (1, sub, 1), 1)
    base = k * t_block
    n_sub = t_block // sub

    def body(i, carry):
        s_acc, q_acc = carry
        start = pl.multiple_of(i * sub, sub)
        xs = x_ref[:, pl.ds(start, sub), :].astype(jnp.float32)   # (Bt, sub, D)
        dc = xs - shift
        if needs_mask:
            # Zero rows past the true T (boundary block contents are undefined).
            mask = (base + start + iota) < t_total
            dc = jnp.where(mask, dc, 0.0)
        s_acc = s_acc + jnp.sum(dc, axis=1)          # (Bt, D)
        q_acc = q_acc + jnp.sum(dc * dc, axis=1)     # (Bt, D)
        return s_acc, q_acc

    init = (jnp.zeros((bt, d), jnp.float32), jnp.zeros((bt, d), jnp.float32))
    s, q = lax.fori_loop(0, n_sub, body, init, unroll=unroll)
    sum_ref[...] += s
    sumsq_ref[...] += q

    @pl.when(k == pl.num_programs(1) - 1)
    def _():
        inv_t = jnp.float32(1.0 / t_total)
        if t_total > 1:
            inv_tm1 = jnp.float32(1.0 / (t_total - 1))
        else:
            inv_tm1 = jnp.float32(jnp.nan)            # torch.std of 1 sample -> NaN
        mean_c = sum_ref[...] * inv_t                 # mean of shifted data
        var = (sumsq_ref[...] - sum_ref[...] * mean_c) * inv_tm1
        var = jnp.maximum(var, 0.0)                   # guard tiny negatives from rounding
        std = jnp.sqrt(var)
        mean = shift_ref[...] + mean_c
        o_ref[:, 0, :] = mean.astype(o_ref.dtype)     # lane-dense slice stores, no concat
        o_ref[:, 1, :] = std.astype(o_ref.dtype)


def stat_pool(x, *, block_bytes_target=8 * 1024 * 1024):
    """StatPoolLayer(dim=1): x of shape (B, T, D) -> (B, 2*D)."""
    B, T, D = x.shape
    itemsize = jnp.dtype(x.dtype).itemsize
    SUB = 8

    # Small Bt / large Tk: longer contiguous per-row DMA, small scratch, more
    # parallel batch steps for megacore. Output block's sublane dim must be a
    # multiple of 8 or the full B, so B < 8 uses the whole batch per step.
    Bt = 8 if B >= 8 else B
    n_b = -(-B // Bt)
    Bp = n_b * Bt                     # only the (tiny) output is over-allocated

    # Time tile: multiple of 8, sized so one input block is ~block_bytes_target
    # (account for lane padding of D to 128 inside VMEM).
    d_lanes = _round_up(D, 128)
    bytes_per_t = max(1, Bt * d_lanes * itemsize)
    tk_cap = max(SUB, (block_bytes_target // bytes_per_t) // SUB * SUB)
    Tk = min(_round_up(T, SUB), tk_cap)
    n_t = -(-T // Tk)
    needs_mask = (n_t * Tk != T)      # boundary time tile needs in-kernel masking

    n_sub = Tk // SUB
    unroll = max(1, min(8, n_sub))

    # Scoped VMEM: 2x double-buffered input block + output blocks + scratch + slack.
    in_block_vmem = Bt * Tk * d_lanes * itemsize
    out_block_vmem = Bt * 8 * d_lanes * itemsize      # (Bt, 2, D) padded to 8 sublanes
    scratch_vmem = 3 * Bt * d_lanes * 4
    vmem_limit = 2 * in_block_vmem + 2 * out_block_vmem + scratch_vmem + (8 << 20)
    vmem_limit = int(min(max(vmem_limit, 24 << 20), 96 << 20))

    kernel = functools.partial(
        _statpool_kernel, t_total=T, t_block=Tk, sub=SUB,
        needs_mask=needs_mask, unroll=unroll)

    out = pl.pallas_call(
        kernel,
        out_shape=jax.ShapeDtypeStruct((Bp, 2, D), x.dtype),
        grid_spec=pltpu.PrefetchScalarGridSpec(
            num_scalar_prefetch=0,
            grid=(n_b, n_t),
            in_specs=[pl.BlockSpec((Bt, Tk, D), lambda b, k: (b, k, 0))],
            out_specs=pl.BlockSpec((Bt, 2, D), lambda b, k: (b, 0, 0)),
            scratch_shapes=[
                pltpu.VMEM((Bt, D), jnp.float32),   # running sum of (x - shift)
                pltpu.VMEM((Bt, D), jnp.float32),   # running sum of (x - shift)^2
                pltpu.VMEM((Bt, D), jnp.float32),   # per-batch-tile shift (first frame)
            ],
        ),
        compiler_params=pltpu.CompilerParams(
            dimension_semantics=("parallel", "arbitrary"),
            vmem_limit_bytes=vmem_limit,
        ),
    )(x)

    if Bp != B:
        out = out[:B]
    # (B, 2, D) row-major -> (B, 2*D) == concat([mean, std], axis=-1); free reshape.
    return out.reshape(B, 2 * D)


def stat_pool_ref(x):
    mean = jnp.mean(x, axis=1)
    std = jnp.std(x, axis=1, ddof=1)   # unbiased, matches torch.std default
    return jnp.concatenate([mean, std], axis=-1)


if __name__ == "__main__":
    key = jax.random.PRNGKey(0)
    k1, k2, k3 = jax.random.split(key, 3)

    # Case 1: small aligned case (B < 8, single time tile, no masking).
    B, T, D = 2, 8, 128
    x = jax.random.normal(k1, (B, T, D), dtype=jnp.float32) + 3.0
    out = stat_pool(x)
    jax.block_until_ready(out)
    ref = stat_pool_ref(x)
    assert out.shape == (B, 2 * D), out.shape
    assert jnp.allclose(out, ref, atol=2e-5, rtol=2e-5), "mismatch vs reference (aligned)"

    # Case 2: unaligned T and D, multiple time tiles, masked tail (no HBM padding copy).
    B2, T2, D2 = 3, 20, 96
    x2 = jax.random.normal(k2, (B2, T2, D2), dtype=jnp.float32)
    out2 = stat_pool(x2, block_bytes_target=8 * 1024)   # tiny target -> Tk=8 -> 3 time tiles
    jax.block_until_ready(out2)
    ref2 = stat_pool_ref(x2)
    assert out2.shape == (B2, 2 * D2), out2.shape
    assert jnp.allclose(out2, ref2, atol=2e-5, rtol=2e-5), "mismatch vs reference (T/D tail)"

    # Case 3: B > 8 and not a multiple of 8 (ragged batch grid + output slice),
    # non-zero mean / small std to exercise the shifted variance path.
    B3, T3, D3 = 11, 24, 64
    x3 = jax.random.normal(k3, (B3, T3, D3), dtype=jnp.float32) * 0.01 + 5.0
    out3 = stat_pool(x3)
    jax.block_until_ready(out3)
    ref3 = stat_pool_ref(x3)
    assert out3.shape == (B3, 2 * D3), out3.shape
    assert jnp.allclose(out3, ref3, atol=2e-5, rtol=2e-5), "mismatch vs reference (ragged B)"

    print("KERNEL_OK")
</pallas_src>

<mosaic_0001>
module attributes {stable_mosaic.version = 11 : i64} {
  func.func @_statpool_kernel(%arg0: i32, %arg1: i32, %arg2: memref<2x8x128xf32, #tpu.memory_space<vmem>>, %arg3: memref<2x2x128xf32, #tpu.memory_space<vmem>>, %arg4: memref<2x128xf32, #tpu.memory_space<vmem>>, %arg5: memref<2x128xf32, #tpu.memory_space<vmem>>, %arg6: memref<2x128xf32, #tpu.memory_space<vmem>>) attributes {dimension_semantics = [#tpu.dimension_semantics<parallel>, #tpu.dimension_semantics<arbitrary>], iteration_bounds = array<i64: 1, 1>, scalar_prefetch = 0 : i64, scratch_operands = 3 : i64, tpu.core_type = #tpu.core_type<tc>, window_params = [{transform_indices = @transform_0, window_bounds = array<i64: 2, 8, 128>}, {transform_indices = @transform_1, window_bounds = array<i64: 2, 2, 128>}]} {
    %c0_i32 = arith.constant 0 : i32
    %0 = arith.cmpi eq, %arg1, %c0_i32 : i32
    %1 = arith.extui %0 : i1 to i32
    %c0_i32_0 = arith.constant 0 : i32
    %2 = arith.cmpi ne, %1, %c0_i32_0 : i32
    scf.if %2 {
      %c0_18 = arith.constant 0 : index
      %c0_19 = arith.constant 0 : index
      %c0_20 = arith.constant 0 : index
      %28 = vector.load %arg2[%c0_18, %c0_19, %c0_20] : memref<2x8x128xf32, #tpu.memory_space<vmem>>, vector<2x1x128xf32>
      %29 = vector.shape_cast %28 : vector<2x1x128xf32> to vector<2x128xf32>
      %c0_21 = arith.constant 0 : index
      %c0_22 = arith.constant 0 : index
      %30 = vector.load %arg6[%c0_21, %c0_22] : memref<2x128xf32, #tpu.memory_space<vmem>>, vector<2x128xf32>
      tpu.vector_store %arg6[%c0_21, %c0_22], %29 {strides = array<i32>} : memref<2x128xf32, #tpu.memory_space<vmem>>, vector<2x128xf32>,
      %cst_23 = arith.constant 0.000000e+00 : f32
      %31 = vector.broadcast %cst_23 : f32 to vector<2x128xf32>
      %c0_24 = arith.constant 0 : index
      %c0_25 = arith.constant 0 : index
      %32 = vector.load %arg4[%c0_24, %c0_25] : memref<2x128xf32, #tpu.memory_space<vmem>>, vector<2x128xf32>
      tpu.vector_store %arg4[%c0_24, %c0_25], %31 {strides = array<i32>} : memref<2x128xf32, #tpu.memory_space<vmem>>, vector<2x128xf32>,
      %cst_26 = arith.constant 0.000000e+00 : f32
      %33 = vector.broadcast %cst_26 : f32 to vector<2x128xf32>
      %c0_27 = arith.constant 0 : index
      %c0_28 = arith.constant 0 : index
      %34 = vector.load %arg5[%c0_27, %c0_28] : memref<2x128xf32, #tpu.memory_space<vmem>>, vector<2x128xf32>
      tpu.vector_store %arg5[%c0_27, %c0_28], %33 {strides = array<i32>} : memref<2x128xf32, #tpu.memory_space<vmem>>, vector<2x128xf32>,
    } else {
    }
    %c0 = arith.constant 0 : index
    %c0_1 = arith.constant 0 : index
    %3 = vector.load %arg6[%c0, %c0_1] : memref<2x128xf32, #tpu.memory_space<vmem>>, vector<2x128xf32>
    %4 = vector.shape_cast %3 : vector<2x128xf32> to vector<2x1x128xf32>
    %5 = vector.shape_cast %4 : vector<2x1x128xf32> to vector<2x1x128xf32>
    %6 = vector.broadcast %5 : vector<2x1x128xf32> to vector<2x8x128xf32>
    %cst = arith.constant 0.000000e+00 : f32
    %7 = vector.broadcast %cst : f32 to vector<2x128xf32>
    %cst_2 = arith.constant 0.000000e+00 : f32
    %8 = vector.broadcast %cst_2 : f32 to vector<2x128xf32>
    %c0_i32_3 = arith.constant 0 : i32
    %c8_i32 = arith.constant 8 : i32
    %9 = arith.muli %c0_i32_3, %c8_i32 : i32
    %10 = tpu.assume_multiple %9, 8 : i32
    %c0_4 = arith.constant 0 : index
    %11 = arith.index_cast %10 : i32 to index
    %c0_5 = arith.constant 0 : index
    %12 = vector.load %arg2[%c0_4, %11, %c0_5] : memref<2x8x128xf32, #tpu.memory_space<vmem>>, vector<2x8x128xf32>
    %13 = arith.subf %12, %6 : vector<2x8x128xf32>
    %cst_6 = arith.constant dense<0.000000e+00> : vector<2x128xf32>
    %14 = vector.multi_reduction <add>, %13, %cst_6 [1] : vector<2x8x128xf32> to vector<2x128xf32>
    %15 = arith.addf %7, %14 : vector<2x128xf32>
    %16 = arith.mulf %13, %13 : vector<2x8x128xf32>
    %cst_7 = arith.constant dense<0.000000e+00> : vector<2x128xf32>
    %17 = vector.multi_reduction <add>, %16, %cst_7 [1] : vector<2x8x128xf32> to vector<2x128xf32>
    %18 = arith.addf %8, %17 : vector<2x128xf32>
    %c1_i32 = arith.constant 1 : i32
    %c0_8 = arith.constant 0 : index
    %c0_9 = arith.constant 0 : index
    %19 = vector.load %arg4[%c0_8, %c0_9] : memref<2x128xf32, #tpu.memory_space<vmem>>, vector<2x128xf32>
    %20 = arith.addf %19, %15 : vector<2x128xf32>
    %c0_10 = arith.constant 0 : index
    %c0_11 = arith.constant 0 : index
    %21 = vector.load %arg4[%c0_10, %c0_11] : memref<2x128xf32, #tpu.memory_space<vmem>>, vector<2x128xf32>
    tpu.vector_store %arg4[%c0_10, %c0_11], %20 {strides = array<i32>} : memref<2x128xf32, #tpu.memory_space<vmem>>, vector<2x128xf32>,
    %c0_12 = arith.constant 0 : index
    %c0_13 = arith.constant 0 : index
    %22 = vector.load %arg5[%c0_12, %c0_13] : memref<2x128xf32, #tpu.memory_space<vmem>>, vector<2x128xf32>
    %23 = arith.addf %22, %18 : vector<2x128xf32>
    %c0_14 = arith.constant 0 : index
    %c0_15 = arith.constant 0 : index
    %24 = vector.load %arg5[%c0_14, %c0_15] : memref<2x128xf32, #tpu.memory_space<vmem>>, vector<2x128xf32>
    tpu.vector_store %arg5[%c0_14, %c0_15], %23 {strides = array<i32>} : memref<2x128xf32, #tpu.memory_space<vmem>>, vector<2x128xf32>,
    %c0_i32_16 = arith.constant 0 : i32
    %25 = arith.cmpi eq, %arg1, %c0_i32_16 : i32
    %26 = arith.extui %25 : i1 to i32
    %c0_i32_17 = arith.constant 0 : i32
    %27 = arith.cmpi ne, %26, %c0_i32_17 : i32
    scf.if %27 {
      %c0_18 = arith.constant 0 : index
      %c0_19 = arith.constant 0 : index
      %28 = vector.load %arg4[%c0_18, %c0_19] : memref<2x128xf32, #tpu.memory_space<vmem>>, vector<2x128xf32>
      %cst_20 = arith.constant 1.250000e-01 : f32
      %29 = vector.broadcast %cst_20 : f32 to vector<2x128xf32>
      %30 = arith.mulf %28, %29 : vector<2x128xf32>
      %c0_21 = arith.constant 0 : index
      %c0_22 = arith.constant 0 : index
      %31 = vector.load %arg5[%c0_21, %c0_22] : memref<2x128xf32, #tpu.memory_space<vmem>>, vector<2x128xf32>
      %c0_23 = arith.constant 0 : index
      %c0_24 = arith.constant 0 : index
      %32 = vector.load %arg4[%c0_23, %c0_24] : memref<2x128xf32, #tpu.memory_space<vmem>>, vector<2x128xf32>
      %33 = arith.mulf %32, %30 : vector<2x128xf32>
      %34 = arith.subf %31, %33 : vector<2x128xf32>
      %cst_25 = arith.constant 0.142857149 : f32
      %35 = vector.broadcast %cst_25 : f32 to vector<2x128xf32>
      %36 = arith.mulf %34, %35 : vector<2x128xf32>
      %cst_26 = arith.constant 0.000000e+00 : f32
      %37 = vector.broadcast %cst_26 : f32 to vector<2x128xf32>
      %38 = arith.maximumf %36, %37 : vector<2x128xf32>
      %39 = math.sqrt %38 : vector<2x128xf32>
      %c0_27 = arith.constant 0 : index
      %c0_28 = arith.constant 0 : index
      %40 = vector.load %arg6[%c0_27, %c0_28] : memref<2x128xf32, #tpu.memory_space<vmem>>, vector<2x128xf32>
      %41 = arith.addf %40, %30 : vector<2x128xf32>
      %c0_29 = arith.constant 0 : index
      %c0_30 = arith.constant 0 : index
      %c0_31 = arith.constant 0 : index
      %42 = vector.load %arg3[%c0_29, %c0_30, %c0_31] : memref<2x2x128xf32, #tpu.memory_space<vmem>>, vector<2x1x128xf32>
      %43 = vector.shape_cast %42 : vector<2x1x128xf32> to vector<2x128xf32>
      %44 = vector.shape_cast %41 : vector<2x128xf32> to vector<2x1x128xf32>
      tpu.vector_store %arg3[%c0_29, %c0_30, %c0_31], %44 {strides = array<i32>} : memref<2x2x128xf32, #tpu.memory_space<vmem>>, vector<2x1x128xf32>,
      %c0_32 = arith.constant 0 : index
      %c1 = arith.constant 1 : index
      %c0_33 = arith.constant 0 : index
      %45 = vector.load %arg3[%c0_32, %c1, %c0_33] : memref<2x2x128xf32, #tpu.memory_space<vmem>>, vector<2x1x128xf32>
      %46 = vector.shape_cast %45 : vector<2x1x128xf32> to vector<2x128xf32>
      %47 = vector.shape_cast %39 : vector<2x128xf32> to vector<2x1x128xf32>
      tpu.vector_store %arg3[%c0_32, %c1, %c0_33], %47 {strides = array<i32>} : memref<2x2x128xf32, #tpu.memory_space<vmem>>, vector<2x1x128xf32>,
    } else {
    }
    return
  }
  func.func @transform_0(%arg0: i32, %arg1: i32) -> (i32, i32, i32) {
    %c0_i32 = arith.constant 0 : i32
    %c0_i32_0 = arith.constant 0 : i32
    return %arg0, %arg1, %c0_i32 : i32, i32, i32
  }
  func.func @transform_1(%arg0: i32, %arg1: i32) -> (i32, i32, i32) {
    %c0_i32 = arith.constant 0 : i32
    %c0_i32_0 = arith.constant 0 : i32
    %c0_i32_1 = arith.constant 0 : i32
    return %arg0, %c0_i32, %c0_i32_0 : i32, i32, i32
  }
}

</mosaic_0001>

<llo_original>
// kernel: tpu_custom_call.1
$region0: #{tpu_custom_call.1}
  #allocation0 [shape = 'u32[]', space=smem, size = 0x4, offset = 0x4, fixed_abs, tag = 'smem constant byte address 0x4 - core index']
  #allocation1 [shape = 'u32[144,128]{1,0:T(1,128)}', space=vmem, size = 0x12000, scoped, tag = 'internal scratch']
  #allocation2 [shape = 'f32[2,128]{1,0:T(2,128)}', space=vmem, size = 0x400, scoped, tag = 'scratch operand']
  #allocation3 [shape = 'f32[2,128]{1,0:T(2,128)}', space=vmem, size = 0x400, scoped, tag = 'scratch operand']
  #allocation4 [shape = 'f32[2,128]{1,0:T(2,128)}', space=vmem, size = 0x400, scoped, tag = 'scratch operand']
  %s0 = inlined_call_operand.hbm [shape: f32[2,8,128], index: 0, kind: input, shape index: {}]
  %s1 = inlined_call_operand.hbm [shape: f32[2,2,128], index: 1, kind: output, shape index: {}]
  %s2 = sld [smem:[#allocation0]]
  $region26: #{tpu_custom_call.1} parent=0
    _
  %s4 = ssub.s32 1, %s2
  %s5 = scalar_select 0, %s4, %s2
  $region1: #{tpu_custom_call.1} parent=0
    #allocation5 [shape = 'u8[8192]{0}', space=vmem, size = 0x2000, scoped, tag = 'input window, operand 0, single buffered']
    #allocation6 [shape = 's32[1]{0}', space=sflag, size = 0x4, scoped, tag = 'scoped memory for tpu_custom_call.1']
    #allocation7 [shape = 's32[1]{0}', space=sflag, size = 0x4, scoped, tag = 'scoped memory for tpu_custom_call.1']
    #allocation8 [shape = 'u8[2048]{0}', space=vmem, size = 0x800, scoped, tag = 'output window, operand 0, single buffered']
    %6 = vsyncpa [#allocation6], 0
    %7 = vsyncpa [#allocation7], 0
    // Predicated region
    $region2: #{tpu_custom_call.1} parent=1 // pred_check
      _
    $region3: #{tpu_custom_call.1} parent=1 // pred_check_branch
      %9 = sbr.rel (0) target = $region5
    $region4: #{tpu_custom_call.1} parent=1 // pred_region
      %s11 = ssub.s32 256, 256
      %12 = vsyncadd [#allocation6], %s11
      %s13 = sshll.u32 [#allocation5], 4
      %s14 = int_to_ptr.vmem [resolvable:$true] %s13
      %19 = dma.hbm_to_vmem [thread:$0]  %s0, 256, %s14, [#allocation6], 128, 128, 8
    $region5: #{tpu_custom_call.1} parent=1 // pred_fallthru
      _
    // Predicated region
    $region6: #{tpu_custom_call.1} parent=1 // pred_check
      _
    $region7: #{tpu_custom_call.1} parent=1 // pred_check_branch
      %21 = sbr.rel (0) target = $region9
    $region8: #{tpu_custom_call.1} parent=1 // pred_region
      %22 = dma.done [#allocation6], 256
    $region9: #{tpu_custom_call.1} parent=1 // pred_fallthru
      _
    %p23 = scmp.eq.s32.totalorder 0, 0
    // Predicated region
    $region10: #{tpu_custom_call.1} parent=1 // pred_check
      %p24 = pneg %p23
    $region11: #{tpu_custom_call.1} parent=1 // pred_check_branch
      %26 = sbr.rel (%p24) target = $region13
    $region12: #{tpu_custom_call.1} parent=1 // pred_region
      %v27 = vld [vmem:[#allocation5] sm:$0x1]
      %v28 = vld [vmem:[#allocation5 + $0x8] sm:$0x1]
      %v31 = vrot.slane %v28, 7
      %vm32 = vcmask 1041409
      %v33 = vsel %vm32, %v31, %v27
      %35 = vst [vmem:[#allocation4] sm:$0x3] %v33
      %36 = vst [vmem:[#allocation2] sm:$0x3] 0.0
      %37 = vst [vmem:[#allocation3] sm:$0x3] 0.0
    $region13: #{tpu_custom_call.1} parent=1 // pred_fallthru
      _
    %v38 = vld [vmem:[#allocation4] sm:$0x3]
    %v41 = vunpack.c.l.s4 1966171168
    %v42 = vunpack.c.0.s8 %v41
    %v43 = vlaneseq
    %v44 = vshrl.u32 %v43, 7
    %v45 = vsub.s32 %v42, %v44
    %v46 = vrot.slane %v38, %v45
    %v47 = vcombine.high %v46, %v46
    %v49 = vunpack.c.l.s4 1966171168
    %v50 = vunpack.c.0.s8 %v49
    %v51 = vlaneseq
    %v52 = vshrl.u32 %v51, 7
    %v53 = vsub.s32 %v50, %v52
    %v54 = vrot.slane %v46, %v53
    %v56 = vunpack.c.l.s4 1966171168
    %v57 = vunpack.c.0.s8 %v56
    %v58 = vlaneseq
    %v59 = vshrl.u32 %v58, 7
    %v60 = vsub.s32 %v57, %v59
    %v61 = vrot.slane %v47, %v60
    %v62 = vlaneseq
    %v63 = vshrl.u32 %v62, 7
    %v64 = vsub.s32 0, %v63
    %v65 = vrot.slane %v54, %v64
    %v66 = vlaneseq
    %v67 = vshrl.u32 %v66, 7
    %v68 = vsub.s32 0, %v67
    %v69 = vrot.slane %v61, %v68
    %v72 = vld [vmem:[#allocation5] sm:$0xff]
    %v73 = vld [vmem:[#allocation5 + $0x8] sm:$0xff]
    %v74 = vsub.f32 %v72, %v65
    %v75 = vsub.f32 %v73, %v69
    %v76 = vrot.slane %v74, 4
    %v77 = vadd.f32 %v74, %v76
    %v78 = vrot.slane %v77, 2
    %v79 = vadd.f32 %v77, %v78
    %v80 = vrot.slane %v79, 1
    %v81 = vadd.f32 %v79, %v80
    %v82 = vrot.slane %v75, 4
    %v83 = vadd.f32 %v75, %v82
    %v84 = vrot.slane %v83, 2
    %v85 = vadd.f32 %v83, %v84
    %v86 = vrot.slane %v85, 1
    %v87 = vadd.f32 %v85, %v86
    %v88 = vadd.f32 %v81, 0.0
    %v89 = vadd.f32 %v87, 0.0
    %v90 = vmul.f32 %v74, %v74
    %v91 = vmul.f32 %v75, %v75
    %v92 = vrot.slane %v90, 4
    %v93 = vadd.f32 %v90, %v92
    %v94 = vrot.slane %v93, 2
    %v95 = vadd.f32 %v93, %v94
    %v96 = vrot.slane %v95, 1
    %v97 = vadd.f32 %v95, %v96
    %v98 = vrot.slane %v91, 4
    %v99 = vadd.f32 %v91, %v98
    %v100 = vrot.slane %v99, 2
    %v101 = vadd.f32 %v99, %v100
    %v102 = vrot.slane %v101, 1
    %v103 = vadd.f32 %v101, %v102
    %v104 = vadd.f32 %v97, 0.0
    %v105 = vadd.f32 %v103, 0.0
    %v106 = vld [vmem:[#allocation2] sm:$0x3]
    %vm109 = vcmask 1041409
    %v110 = vsel %vm109, %v89, %v88
    %v112 = vadd.f32 %v106, %v110
    %113 = vst [vmem:[#allocation2] sm:$0x3] %v112
    %v114 = vld [vmem:[#allocation3] sm:$0x3]
    %v117 = vsel %vm109, %v105, %v104
    %v119 = vadd.f32 %v114, %v117
    %120 = vst [vmem:[#allocation3] sm:$0x3] %v119
    // Predicated region
    $region14: #{tpu_custom_call.1} parent=1 // pred_check
      %p121 = pneg %p23
    $region15: #{tpu_custom_call.1} parent=1 // pred_check_branch
      %123 = sbr.rel (%p121) target = $region17
    $region16: #{tpu_custom_call.1} parent=1 // pred_region
      %v124 = vld [vmem:[#allocation2] sm:$0x3]
      %v125 = vmul.f32 %v124, 0.125
      %v126 = vld [vmem:[#allocation3] sm:$0x3]
      %v127 = vmul.f32 %v124, %v125
      %v128 = vsub.f32 %v126, %v127
      %v129 = vmul.f32 %v128, 0.14285715
      %v130 = vmax.f32 %v129, 0.0
      %v131 = vrsqrt.pop %v130
      %v132 = vmul.f32 %v130, %v131
      %vm133 = vcmp.eq.f32.partialorder %v130, inf
      %v134 = vsel %vm133, %v130, %v132
      %vm135 = vcmp.eq.f32.partialorder %v130, 0.0
      %v136 = vand.u32 %v130, 2147483648
      %v137 = vsel %vm135, %v136, %v134
      %v138 = vld [vmem:[#allocation4] sm:$0x3]
      %v139 = vadd.f32 %v138, %v125
      %v142 = vunpack.c.l.s4 1966171168
      %v143 = vunpack.c.0.s8 %v142
      %v144 = vlaneseq
      %v145 = vshrl.u32 %v144, 7
      %v146 = vsub.s32 %v143, %v145
      %v147 = vrot.slane %v139, %v146
      %v148 = vcombine.high %v147, %v147
      %v150 = vunpack.c.l.s4 1966171168
      %v151 = vunpack.c.0.s8 %v150
      %v152 = vlaneseq
      %v153 = vshrl.u32 %v152, 7
      %v154 = vsub.s32 %v151, %v153
      %v155 = vrot.slane %v147, %v154
      %v157 = vunpack.c.l.s4 1966171168
      %v158 = vunpack.c.0.s8 %v157
      %v159 = vlaneseq
      %v160 = vshrl.u32 %v159, 7
      %v161 = vsub.s32 %v158, %v160
      %v162 = vrot.slane %v148, %v161
      %165 = vst [vmem:[#allocation8] sm:$0x1] %v155
      %166 = vst [vmem:[#allocation8 + $0x2] sm:$0x1] %v162
      %v169 = vunpack.c.l.s4 1966171168
      %v170 = vunpack.c.0.s8 %v169
      %v171 = vlaneseq
      %v172 = vshrl.u32 %v171, 7
      %v173 = vsub.s32 %v170, %v172
      %v174 = vrot.slane %v137, %v173
      %v175 = vcombine.high %v174, %v174
      %v177 = vunpack.c.l.s4 1966171168
      %v178 = vunpack.c.0.s8 %v177
      %v179 = vlaneseq
      %v180 = vshrl.u32 %v179, 7
      %v181 = vsub.s32 %v178, %v180
      %v182 = vrot.slane %v174, %v181
      %v184 = vunpack.c.l.s4 1966171168
      %v185 = vunpack.c.0.s8 %v184
      %v186 = vlaneseq
      %v187 = vshrl.u32 %v186, 7
      %v188 = vsub.s32 %v185, %v187
      %v189 = vrot.slane %v175, %v188
      %192 = vst [vmem:[#allocation8 + $0x1] sm:$0x1] %v182
      %193 = vst [vmem:[#allocation8 + $0x3] sm:$0x1] %v189
    $region17: #{tpu_custom_call.1} parent=1 // pred_fallthru
      _
    // Predicated region
    $region18: #{tpu_custom_call.1} parent=1 // pred_check
      _
    $region19: #{tpu_custom_call.1} parent=1 // pred_check_branch
      %195 = sbr.rel (0) target = $region21
    $region20: #{tpu_custom_call.1} parent=1 // pred_region
      %s197 = ssub.s32 64, 64
      %198 = vsyncadd [#allocation7], %s197
      %s199 = sshll.u32 [#allocation8], 4
      %s200 = int_to_ptr.vmem [resolvable:$true] %s199
      %205 = dma.vmem_to_hbm [thread:$0]  %s200, 64, %s1, [#allocation7], 32, 32, 2
    $region21: #{tpu_custom_call.1} parent=1 // pred_fallthru
      _
    // Predicated region
    $region22: #{tpu_custom_call.1} parent=1 // pred_check
      _
    $region23: #{tpu_custom_call.1} parent=1 // pred_check_branch
      %207 = sbr.rel (0) target = $region25
    $region24: #{tpu_custom_call.1} parent=1 // pred_region
      %208 = dma.done [#allocation7], 64
    $region25: #{tpu_custom_call.1} parent=1 // pred_fallthru
      _
    %209 = vsyncpa [#allocation6], 1
    %210 = vsyncpa [#allocation7], 1

</llo_original>
